<compile_context>
chip_gen: v6e
topology: v6e:2x2x1
jax: 0.10.0
libtpu: 0.0.40
codegen_flags: <defaults>
</compile_context>

<pallas_src>
import functools

import jax
import jax.numpy as jnp
from jax.experimental import pallas as pl
from jax.experimental.pallas import tpu as pltpu

D_IN, D_H1, D_H2, D_OUT = 8, 4, 6, 1


def mlp_kernel(x_ref, w1_ref, b1_ref, w2_ref, b2_ref, w3_ref, b3_ref, o_ref):
    """x_ref: (8, TB) VMEM tile, batch on lanes.  w*/b*: pre-folded SMEM params.

    Computes (exactly equivalent to sigmoid/sigmoid/sigmoid MLP):
        t1 = tanh(x  @ w1' + b1')
        t2 = tanh(t1 @ w2' + b2')
        t3 = tanh(t2 @ w3' + b3')
        y  = 0.5 * t3 + 0.5
    """
    x = x_ref[...].astype(jnp.float32)
    xr = [x[k:k + 1, :] for k in range(D_IN)]      # 8 x (1, TB) lane-dense rows

    # Layer 1: 8 -> 4  (32 scalar-broadcast FMAs on the VPU, 4 EUP tanh)
    t1 = []
    for j in range(D_H1):
        acc = b1_ref[j] + w1_ref[0, j] * xr[0]
        for k in range(1, D_IN):
            acc = acc + w1_ref[k, j] * xr[k]
        t1.append(jnp.tanh(acc))

    # Layer 2: 4 -> 6  (24 FMAs, 6 tanh)
    t2 = []
    for j in range(D_H2):
        acc = b2_ref[j] + w2_ref[0, j] * t1[0]
        for k in range(1, D_H1):
            acc = acc + w2_ref[k, j] * t1[k]
        t2.append(jnp.tanh(acc))

    # Layer 3: 6 -> 1  (6 FMAs, 1 tanh), single final sigmoid affine,
    # lane-dense (1, TB) store.
    acc = b3_ref[0] + w3_ref[0, 0] * t2[0]
    for k in range(1, D_H2):
        acc = acc + w3_ref[k, 0] * t2[k]
    o_ref[...] = (0.5 * jnp.tanh(acc) + 0.5).astype(o_ref.dtype)


@functools.partial(jax.jit, static_argnames=("tb",))
def mymodel_forward(x, params, *, tb=65536):
    """x: (B, 8) float32 -> (B, 1) float32 (sigmoid MLP forward)."""
    w1, b1, w2, b2, w3, b3 = params
    B, f_in = x.shape
    assert f_in == D_IN

    # Fold sigmoid(z) = 0.5*tanh(0.5*z)+0.5 into the weights (exact algebra):
    #   t1 = tanh(x @ (0.5 w1) + 0.5 b1)
    #   t2 = tanh(t1 @ (0.25 w2) + 0.25*colsum(w2) + 0.5 b2)
    #   t3 = tanh(t2 @ (0.25 w3) + 0.25*colsum(w3) + 0.5 b3)
    #   y  = 0.5 t3 + 0.5
    wt1 = 0.5 * w1
    bt1 = 0.5 * b1
    wt2 = 0.25 * w2
    bt2 = 0.25 * jnp.sum(w2, axis=0) + 0.5 * b2
    wt3 = 0.25 * w3
    bt3 = 0.25 * jnp.sum(w3, axis=0) + 0.5 * b3

    lane = 128
    b_aligned = pl.cdiv(B, lane) * lane             # lane-dense batch
    tb = max(lane, min(int(tb), b_aligned))
    tb = pl.cdiv(tb, lane) * lane                   # tile size, multiple of 128
    bp = pl.cdiv(B, tb) * tb                        # padded batch, multiple of tb
    if bp != B:
        x = jnp.pad(x, ((0, bp - B), (0, 0)))
    x_t = x.T                                       # (8, bp): batch on lanes

    smem = pl.BlockSpec(memory_space=pltpu.MemorySpace.SMEM)
    flops = 2 * B * (D_IN * D_H1 + D_H1 * D_H2 + D_H2 * D_OUT)

    out = pl.pallas_call(
        mlp_kernel,
        out_shape=jax.ShapeDtypeStruct((1, bp), jnp.float32),
        grid=(bp // tb,),
        in_specs=[
            pl.BlockSpec((D_IN, tb), lambda i: (0, i)),   # x tile (pipelined)
            smem, smem, smem, smem, smem, smem,           # folded weights/biases
        ],
        out_specs=pl.BlockSpec((1, tb), lambda i: (0, i)),
        compiler_params=pltpu.CompilerParams(
            dimension_semantics=("parallel",)),
        cost_estimate=pl.CostEstimate(
            flops=flops,
            transcendentals=(D_H1 + D_H2 + D_OUT) * B,
            bytes_accessed=(D_IN + D_OUT) * 4 * B),
    )(x_t, wt1, bt1, wt2, bt2, wt3, bt3)

    return out[0, :B].reshape(B, 1)


def init_params(key):
    """Mimics torch.nn.Linear init: U(-1/sqrt(fan_in), 1/sqrt(fan_in)).

    Weights are stored as (fan_in, fan_out) (transposed vs PyTorch) so the
    math is x @ w + b; biases are 1-D (fan_out,).
    """
    dims = [(D_IN, D_H1), (D_H1, D_H2), (D_H2, D_OUT)]
    params = []
    for fan_in, fan_out in dims:
        key, kw, kb = jax.random.split(key, 3)
        bound = 1.0 / jnp.sqrt(fan_in)
        w = jax.random.uniform(kw, (fan_in, fan_out), jnp.float32, -bound, bound)
        b = jax.random.uniform(kb, (fan_out,), jnp.float32, -bound, bound)
        params += [w, b]
    return tuple(params)


def reference_forward(x, params):
    w1, b1, w2, b2, w3, b3 = params
    h1 = jax.nn.sigmoid(x @ w1 + b1)
    h2 = jax.nn.sigmoid(h1 @ w2 + b2)
    return jax.nn.sigmoid(h2 @ w3 + b3)


if __name__ == "__main__":
    key = jax.random.PRNGKey(0)
    key, kx1, kx2 = jax.random.split(key, 3)
    params = init_params(key)

    # Small batch (module's natural input shape: (B, 8)).
    B1 = 8
    x1 = jax.random.normal(kx1, (B1, D_IN), jnp.float32)
    y1 = mymodel_forward(x1, params)
    jax.block_until_ready(y1)
    assert y1.shape == (B1, 1)
    assert jnp.allclose(y1, reference_forward(x1, params), atol=1e-5, rtol=1e-5)

    # Non-lane-aligned batch (exercises padding + lane-dense tiling).
    B2 = 200
    x2 = jax.random.normal(kx2, (B2, D_IN), jnp.float32)
    y2 = mymodel_forward(x2, params)
    jax.block_until_ready(y2)
    assert y2.shape == (B2, 1)
    assert jnp.allclose(y2, reference_forward(x2, params), atol=1e-5, rtol=1e-5)

    print("KERNEL_OK")
</pallas_src>

<mosaic_0001>
module attributes {stable_mosaic.version = 11 : i64} {
  func.func @mlp_kernel(%arg0: i32, %arg1: memref<8x128xf32, #tpu.memory_space<vmem>>, %arg2: memref<8x4xf32, #tpu.memory_space<smem>>, %arg3: memref<4xf32, #tpu.memory_space<smem>>, %arg4: memref<4x6xf32, #tpu.memory_space<smem>>, %arg5: memref<6xf32, #tpu.memory_space<smem>>, %arg6: memref<6x1xf32, #tpu.memory_space<smem>>, %arg7: memref<1xf32, #tpu.memory_space<smem>>, %arg8: memref<1x128xf32, #tpu.memory_space<vmem>>) attributes {dimension_semantics = [#tpu.dimension_semantics<parallel>], iteration_bounds = array<i64: 1>, scalar_prefetch = 0 : i64, scratch_operands = 0 : i64, tpu.core_type = #tpu.core_type<tc>, window_params = [{transform_indices = @transform_0, window_bounds = array<i64: 8, 128>}, {transform_indices = @transform_1, window_bounds = array<i64: 8, 4>}, {transform_indices = @transform_2, window_bounds = array<i64: 4>}, {transform_indices = @transform_3, window_bounds = array<i64: 4, 6>}, {transform_indices = @transform_4, window_bounds = array<i64: 6>}, {transform_indices = @transform_5, window_bounds = array<i64: 6, 1>}, {transform_indices = @transform_6, window_bounds = array<i64: 1>}, {transform_indices = @transform_7, window_bounds = array<i64: 1, 128>}]} {
    %c0 = arith.constant 0 : index
    %c0_0 = arith.constant 0 : index
    %0 = vector.load %arg1[%c0, %c0_0] : memref<8x128xf32, #tpu.memory_space<vmem>>, vector<8x128xf32>
    %1 = vector.extract_strided_slice %0 {offsets = [0, 0], sizes = [1, 128], strides = [1, 1]} : vector<8x128xf32> to vector<1x128xf32>
    %2 = vector.extract_strided_slice %0 {offsets = [1, 0], sizes = [1, 128], strides = [1, 1]} : vector<8x128xf32> to vector<1x128xf32>
    %3 = vector.extract_strided_slice %0 {offsets = [2, 0], sizes = [1, 128], strides = [1, 1]} : vector<8x128xf32> to vector<1x128xf32>
    %4 = vector.extract_strided_slice %0 {offsets = [3, 0], sizes = [1, 128], strides = [1, 1]} : vector<8x128xf32> to vector<1x128xf32>
    %5 = vector.extract_strided_slice %0 {offsets = [4, 0], sizes = [1, 128], strides = [1, 1]} : vector<8x128xf32> to vector<1x128xf32>
    %6 = vector.extract_strided_slice %0 {offsets = [5, 0], sizes = [1, 128], strides = [1, 1]} : vector<8x128xf32> to vector<1x128xf32>
    %7 = vector.extract_strided_slice %0 {offsets = [6, 0], sizes = [1, 128], strides = [1, 1]} : vector<8x128xf32> to vector<1x128xf32>
    %8 = vector.extract_strided_slice %0 {offsets = [7, 0], sizes = [1, 128], strides = [1, 1]} : vector<8x128xf32> to vector<1x128xf32>
    %c0_1 = arith.constant 0 : index
    %9 = memref.load %arg3[%c0_1] : memref<4xf32, #tpu.memory_space<smem>>
    %c0_2 = arith.constant 0 : index
    %c0_3 = arith.constant 0 : index
    %10 = memref.load %arg2[%c0_2, %c0_3] : memref<8x4xf32, #tpu.memory_space<smem>>
    %11 = vector.broadcast %10 : f32 to vector<1x128xf32>
    %12 = arith.mulf %11, %1 : vector<1x128xf32>
    %13 = vector.broadcast %9 : f32 to vector<1x128xf32>
    %14 = arith.addf %13, %12 : vector<1x128xf32>
    %c1 = arith.constant 1 : index
    %c0_4 = arith.constant 0 : index
    %15 = memref.load %arg2[%c1, %c0_4] : memref<8x4xf32, #tpu.memory_space<smem>>
    %16 = vector.broadcast %15 : f32 to vector<1x128xf32>
    %17 = arith.mulf %16, %2 : vector<1x128xf32>
    %18 = arith.addf %14, %17 : vector<1x128xf32>
    %c2 = arith.constant 2 : index
    %c0_5 = arith.constant 0 : index
    %19 = memref.load %arg2[%c2, %c0_5] : memref<8x4xf32, #tpu.memory_space<smem>>
    %20 = vector.broadcast %19 : f32 to vector<1x128xf32>
    %21 = arith.mulf %20, %3 : vector<1x128xf32>
    %22 = arith.addf %18, %21 : vector<1x128xf32>
    %c3 = arith.constant 3 : index
    %c0_6 = arith.constant 0 : index
    %23 = memref.load %arg2[%c3, %c0_6] : memref<8x4xf32, #tpu.memory_space<smem>>
    %24 = vector.broadcast %23 : f32 to vector<1x128xf32>
    %25 = arith.mulf %24, %4 : vector<1x128xf32>
    %26 = arith.addf %22, %25 : vector<1x128xf32>
    %c4 = arith.constant 4 : index
    %c0_7 = arith.constant 0 : index
    %27 = memref.load %arg2[%c4, %c0_7] : memref<8x4xf32, #tpu.memory_space<smem>>
    %28 = vector.broadcast %27 : f32 to vector<1x128xf32>
    %29 = arith.mulf %28, %5 : vector<1x128xf32>
    %30 = arith.addf %26, %29 : vector<1x128xf32>
    %c5 = arith.constant 5 : index
    %c0_8 = arith.constant 0 : index
    %31 = memref.load %arg2[%c5, %c0_8] : memref<8x4xf32, #tpu.memory_space<smem>>
    %32 = vector.broadcast %31 : f32 to vector<1x128xf32>
    %33 = arith.mulf %32, %6 : vector<1x128xf32>
    %34 = arith.addf %30, %33 : vector<1x128xf32>
    %c6 = arith.constant 6 : index
    %c0_9 = arith.constant 0 : index
    %35 = memref.load %arg2[%c6, %c0_9] : memref<8x4xf32, #tpu.memory_space<smem>>
    %36 = vector.broadcast %35 : f32 to vector<1x128xf32>
    %37 = arith.mulf %36, %7 : vector<1x128xf32>
    %38 = arith.addf %34, %37 : vector<1x128xf32>
    %c7 = arith.constant 7 : index
    %c0_10 = arith.constant 0 : index
    %39 = memref.load %arg2[%c7, %c0_10] : memref<8x4xf32, #tpu.memory_space<smem>>
    %40 = vector.broadcast %39 : f32 to vector<1x128xf32>
    %41 = arith.mulf %40, %8 : vector<1x128xf32>
    %42 = arith.addf %38, %41 : vector<1x128xf32>
    %43 = math.tanh %42 : vector<1x128xf32>
    %c1_11 = arith.constant 1 : index
    %44 = memref.load %arg3[%c1_11] : memref<4xf32, #tpu.memory_space<smem>>
    %c0_12 = arith.constant 0 : index
    %c1_13 = arith.constant 1 : index
    %45 = memref.load %arg2[%c0_12, %c1_13] : memref<8x4xf32, #tpu.memory_space<smem>>
    %46 = vector.broadcast %45 : f32 to vector<1x128xf32>
    %47 = arith.mulf %46, %1 : vector<1x128xf32>
    %48 = vector.broadcast %44 : f32 to vector<1x128xf32>
    %49 = arith.addf %48, %47 : vector<1x128xf32>
    %c1_14 = arith.constant 1 : index
    %c1_15 = arith.constant 1 : index
    %50 = memref.load %arg2[%c1_14, %c1_15] : memref<8x4xf32, #tpu.memory_space<smem>>
    %51 = vector.broadcast %50 : f32 to vector<1x128xf32>
    %52 = arith.mulf %51, %2 : vector<1x128xf32>
    %53 = arith.addf %49, %52 : vector<1x128xf32>
    %c2_16 = arith.constant 2 : index
    %c1_17 = arith.constant 1 : index
    %54 = memref.load %arg2[%c2_16, %c1_17] : memref<8x4xf32, #tpu.memory_space<smem>>
    %55 = vector.broadcast %54 : f32 to vector<1x128xf32>
    %56 = arith.mulf %55, %3 : vector<1x128xf32>
    %57 = arith.addf %53, %56 : vector<1x128xf32>
    %c3_18 = arith.constant 3 : index
    %c1_19 = arith.constant 1 : index
    %58 = memref.load %arg2[%c3_18, %c1_19] : memref<8x4xf32, #tpu.memory_space<smem>>
    %59 = vector.broadcast %58 : f32 to vector<1x128xf32>
    %60 = arith.mulf %59, %4 : vector<1x128xf32>
    %61 = arith.addf %57, %60 : vector<1x128xf32>
    %c4_20 = arith.constant 4 : index
    %c1_21 = arith.constant 1 : index
    %62 = memref.load %arg2[%c4_20, %c1_21] : memref<8x4xf32, #tpu.memory_space<smem>>
    %63 = vector.broadcast %62 : f32 to vector<1x128xf32>
    %64 = arith.mulf %63, %5 : vector<1x128xf32>
    %65 = arith.addf %61, %64 : vector<1x128xf32>
    %c5_22 = arith.constant 5 : index
    %c1_23 = arith.constant 1 : index
    %66 = memref.load %arg2[%c5_22, %c1_23] : memref<8x4xf32, #tpu.memory_space<smem>>
    %67 = vector.broadcast %66 : f32 to vector<1x128xf32>
    %68 = arith.mulf %67, %6 : vector<1x128xf32>
    %69 = arith.addf %65, %68 : vector<1x128xf32>
    %c6_24 = arith.constant 6 : index
    %c1_25 = arith.constant 1 : index
    %70 = memref.load %arg2[%c6_24, %c1_25] : memref<8x4xf32, #tpu.memory_space<smem>>
    %71 = vector.broadcast %70 : f32 to vector<1x128xf32>
    %72 = arith.mulf %71, %7 : vector<1x128xf32>
    %73 = arith.addf %69, %72 : vector<1x128xf32>
    %c7_26 = arith.constant 7 : index
    %c1_27 = arith.constant 1 : index
    %74 = memref.load %arg2[%c7_26, %c1_27] : memref<8x4xf32, #tpu.memory_space<smem>>
    %75 = vector.broadcast %74 : f32 to vector<1x128xf32>
    %76 = arith.mulf %75, %8 : vector<1x128xf32>
    %77 = arith.addf %73, %76 : vector<1x128xf32>
    %78 = math.tanh %77 : vector<1x128xf32>
    %c2_28 = arith.constant 2 : index
    %79 = memref.load %arg3[%c2_28] : memref<4xf32, #tpu.memory_space<smem>>
    %c0_29 = arith.constant 0 : index
    %c2_30 = arith.constant 2 : index
    %80 = memref.load %arg2[%c0_29, %c2_30] : memref<8x4xf32, #tpu.memory_space<smem>>
    %81 = vector.broadcast %80 : f32 to vector<1x128xf32>
    %82 = arith.mulf %81, %1 : vector<1x128xf32>
    %83 = vector.broadcast %79 : f32 to vector<1x128xf32>
    %84 = arith.addf %83, %82 : vector<1x128xf32>
    %c1_31 = arith.constant 1 : index
    %c2_32 = arith.constant 2 : index
    %85 = memref.load %arg2[%c1_31, %c2_32] : memref<8x4xf32, #tpu.memory_space<smem>>
    %86 = vector.broadcast %85 : f32 to vector<1x128xf32>
    %87 = arith.mulf %86, %2 : vector<1x128xf32>
    %88 = arith.addf %84, %87 : vector<1x128xf32>
    %c2_33 = arith.constant 2 : index
    %c2_34 = arith.constant 2 : index
    %89 = memref.load %arg2[%c2_33, %c2_34] : memref<8x4xf32, #tpu.memory_space<smem>>
    %90 = vector.broadcast %89 : f32 to vector<1x128xf32>
    %91 = arith.mulf %90, %3 : vector<1x128xf32>
    %92 = arith.addf %88, %91 : vector<1x128xf32>
    %c3_35 = arith.constant 3 : index
    %c2_36 = arith.constant 2 : index
    %93 = memref.load %arg2[%c3_35, %c2_36] : memref<8x4xf32, #tpu.memory_space<smem>>
    %94 = vector.broadcast %93 : f32 to vector<1x128xf32>
    %95 = arith.mulf %94, %4 : vector<1x128xf32>
    %96 = arith.addf %92, %95 : vector<1x128xf32>
    %c4_37 = arith.constant 4 : index
    %c2_38 = arith.constant 2 : index
    %97 = memref.load %arg2[%c4_37, %c2_38] : memref<8x4xf32, #tpu.memory_space<smem>>
    %98 = vector.broadcast %97 : f32 to vector<1x128xf32>
    %99 = arith.mulf %98, %5 : vector<1x128xf32>
    %100 = arith.addf %96, %99 : vector<1x128xf32>
    %c5_39 = arith.constant 5 : index
    %c2_40 = arith.constant 2 : index
    %101 = memref.load %arg2[%c5_39, %c2_40] : memref<8x4xf32, #tpu.memory_space<smem>>
    %102 = vector.broadcast %101 : f32 to vector<1x128xf32>
    %103 = arith.mulf %102, %6 : vector<1x128xf32>
    %104 = arith.addf %100, %103 : vector<1x128xf32>
    %c6_41 = arith.constant 6 : index
    %c2_42 = arith.constant 2 : index
    %105 = memref.load %arg2[%c6_41, %c2_42] : memref<8x4xf32, #tpu.memory_space<smem>>
    %106 = vector.broadcast %105 : f32 to vector<1x128xf32>
    %107 = arith.mulf %106, %7 : vector<1x128xf32>
    %108 = arith.addf %104, %107 : vector<1x128xf32>
    %c7_43 = arith.constant 7 : index
    %c2_44 = arith.constant 2 : index
    %109 = memref.load %arg2[%c7_43, %c2_44] : memref<8x4xf32, #tpu.memory_space<smem>>
    %110 = vector.broadcast %109 : f32 to vector<1x128xf32>
    %111 = arith.mulf %110, %8 : vector<1x128xf32>
    %112 = arith.addf %108, %111 : vector<1x128xf32>
    %113 = math.tanh %112 : vector<1x128xf32>
    %c3_45 = arith.constant 3 : index
    %114 = memref.load %arg3[%c3_45] : memref<4xf32, #tpu.memory_space<smem>>
    %c0_46 = arith.constant 0 : index
    %c3_47 = arith.constant 3 : index
    %115 = memref.load %arg2[%c0_46, %c3_47] : memref<8x4xf32, #tpu.memory_space<smem>>
    %116 = vector.broadcast %115 : f32 to vector<1x128xf32>
    %117 = arith.mulf %116, %1 : vector<1x128xf32>
    %118 = vector.broadcast %114 : f32 to vector<1x128xf32>
    %119 = arith.addf %118, %117 : vector<1x128xf32>
    %c1_48 = arith.constant 1 : index
    %c3_49 = arith.constant 3 : index
    %120 = memref.load %arg2[%c1_48, %c3_49] : memref<8x4xf32, #tpu.memory_space<smem>>
    %121 = vector.broadcast %120 : f32 to vector<1x128xf32>
    %122 = arith.mulf %121, %2 : vector<1x128xf32>
    %123 = arith.addf %119, %122 : vector<1x128xf32>
    %c2_50 = arith.constant 2 : index
    %c3_51 = arith.constant 3 : index
    %124 = memref.load %arg2[%c2_50, %c3_51] : memref<8x4xf32, #tpu.memory_space<smem>>
    %125 = vector.broadcast %124 : f32 to vector<1x128xf32>
    %126 = arith.mulf %125, %3 : vector<1x128xf32>
    %127 = arith.addf %123, %126 : vector<1x128xf32>
    %c3_52 = arith.constant 3 : index
    %c3_53 = arith.constant 3 : index
    %128 = memref.load %arg2[%c3_52, %c3_53] : memref<8x4xf32, #tpu.memory_space<smem>>
    %129 = vector.broadcast %128 : f32 to vector<1x128xf32>
    %130 = arith.mulf %129, %4 : vector<1x128xf32>
    %131 = arith.addf %127, %130 : vector<1x128xf32>
    %c4_54 = arith.constant 4 : index
    %c3_55 = arith.constant 3 : index
    %132 = memref.load %arg2[%c4_54, %c3_55] : memref<8x4xf32, #tpu.memory_space<smem>>
    %133 = vector.broadcast %132 : f32 to vector<1x128xf32>
    %134 = arith.mulf %133, %5 : vector<1x128xf32>
    %135 = arith.addf %131, %134 : vector<1x128xf32>
    %c5_56 = arith.constant 5 : index
    %c3_57 = arith.constant 3 : index
    %136 = memref.load %arg2[%c5_56, %c3_57] : memref<8x4xf32, #tpu.memory_space<smem>>
    %137 = vector.broadcast %136 : f32 to vector<1x128xf32>
    %138 = arith.mulf %137, %6 : vector<1x128xf32>
    %139 = arith.addf %135, %138 : vector<1x128xf32>
    %c6_58 = arith.constant 6 : index
    %c3_59 = arith.constant 3 : index
    %140 = memref.load %arg2[%c6_58, %c3_59] : memref<8x4xf32, #tpu.memory_space<smem>>
    %141 = vector.broadcast %140 : f32 to vector<1x128xf32>
    %142 = arith.mulf %141, %7 : vector<1x128xf32>
    %143 = arith.addf %139, %142 : vector<1x128xf32>
    %c7_60 = arith.constant 7 : index
    %c3_61 = arith.constant 3 : index
    %144 = memref.load %arg2[%c7_60, %c3_61] : memref<8x4xf32, #tpu.memory_space<smem>>
    %145 = vector.broadcast %144 : f32 to vector<1x128xf32>
    %146 = arith.mulf %145, %8 : vector<1x128xf32>
    %147 = arith.addf %143, %146 : vector<1x128xf32>
    %148 = math.tanh %147 : vector<1x128xf32>
    %c0_62 = arith.constant 0 : index
    %149 = memref.load %arg5[%c0_62] : memref<6xf32, #tpu.memory_space<smem>>
    %c0_63 = arith.constant 0 : index
    %c0_64 = arith.constant 0 : index
    %150 = memref.load %arg4[%c0_63, %c0_64] : memref<4x6xf32, #tpu.memory_space<smem>>
    %151 = vector.broadcast %150 : f32 to vector<1x128xf32>
    %152 = arith.mulf %151, %43 : vector<1x128xf32>
    %153 = vector.broadcast %149 : f32 to vector<1x128xf32>
    %154 = arith.addf %153, %152 : vector<1x128xf32>
    %c1_65 = arith.constant 1 : index
    %c0_66 = arith.constant 0 : index
    %155 = memref.load %arg4[%c1_65, %c0_66] : memref<4x6xf32, #tpu.memory_space<smem>>
    %156 = vector.broadcast %155 : f32 to vector<1x128xf32>
    %157 = arith.mulf %156, %78 : vector<1x128xf32>
    %158 = arith.addf %154, %157 : vector<1x128xf32>
    %c2_67 = arith.constant 2 : index
    %c0_68 = arith.constant 0 : index
    %159 = memref.load %arg4[%c2_67, %c0_68] : memref<4x6xf32, #tpu.memory_space<smem>>
    %160 = vector.broadcast %159 : f32 to vector<1x128xf32>
    %161 = arith.mulf %160, %113 : vector<1x128xf32>
    %162 = arith.addf %158, %161 : vector<1x128xf32>
    %c3_69 = arith.constant 3 : index
    %c0_70 = arith.constant 0 : index
    %163 = memref.load %arg4[%c3_69, %c0_70] : memref<4x6xf32, #tpu.memory_space<smem>>
    %164 = vector.broadcast %163 : f32 to vector<1x128xf32>
    %165 = arith.mulf %164, %148 : vector<1x128xf32>
    %166 = arith.addf %162, %165 : vector<1x128xf32>
    %167 = math.tanh %166 : vector<1x128xf32>
    %c1_71 = arith.constant 1 : index
    %168 = memref.load %arg5[%c1_71] : memref<6xf32, #tpu.memory_space<smem>>
    %c0_72 = arith.constant 0 : index
    %c1_73 = arith.constant 1 : index
    %169 = memref.load %arg4[%c0_72, %c1_73] : memref<4x6xf32, #tpu.memory_space<smem>>
    %170 = vector.broadcast %169 : f32 to vector<1x128xf32>
    %171 = arith.mulf %170, %43 : vector<1x128xf32>
    %172 = vector.broadcast %168 : f32 to vector<1x128xf32>
    %173 = arith.addf %172, %171 : vector<1x128xf32>
    %c1_74 = arith.constant 1 : index
    %c1_75 = arith.constant 1 : index
    %174 = memref.load %arg4[%c1_74, %c1_75] : memref<4x6xf32, #tpu.memory_space<smem>>
    %175 = vector.broadcast %174 : f32 to vector<1x128xf32>
    %176 = arith.mulf %175, %78 : vector<1x128xf32>
    %177 = arith.addf %173, %176 : vector<1x128xf32>
    %c2_76 = arith.constant 2 : index
    %c1_77 = arith.constant 1 : index
    %178 = memref.load %arg4[%c2_76, %c1_77] : memref<4x6xf32, #tpu.memory_space<smem>>
    %179 = vector.broadcast %178 : f32 to vector<1x128xf32>
    %180 = arith.mulf %179, %113 : vector<1x128xf32>
    %181 = arith.addf %177, %180 : vector<1x128xf32>
    %c3_78 = arith.constant 3 : index
    %c1_79 = arith.constant 1 : index
    %182 = memref.load %arg4[%c3_78, %c1_79] : memref<4x6xf32, #tpu.memory_space<smem>>
    %183 = vector.broadcast %182 : f32 to vector<1x128xf32>
    %184 = arith.mulf %183, %148 : vector<1x128xf32>
    %185 = arith.addf %181, %184 : vector<1x128xf32>
    %186 = math.tanh %185 : vector<1x128xf32>
    %c2_80 = arith.constant 2 : index
    %187 = memref.load %arg5[%c2_80] : memref<6xf32, #tpu.memory_space<smem>>
    %c0_81 = arith.constant 0 : index
    %c2_82 = arith.constant 2 : index
    %188 = memref.load %arg4[%c0_81, %c2_82] : memref<4x6xf32, #tpu.memory_space<smem>>
    %189 = vector.broadcast %188 : f32 to vector<1x128xf32>
    %190 = arith.mulf %189, %43 : vector<1x128xf32>
    %191 = vector.broadcast %187 : f32 to vector<1x128xf32>
    %192 = arith.addf %191, %190 : vector<1x128xf32>
    %c1_83 = arith.constant 1 : index
    %c2_84 = arith.constant 2 : index
    %193 = memref.load %arg4[%c1_83, %c2_84] : memref<4x6xf32, #tpu.memory_space<smem>>
    %194 = vector.broadcast %193 : f32 to vector<1x128xf32>
    %195 = arith.mulf %194, %78 : vector<1x128xf32>
    %196 = arith.addf %192, %195 : vector<1x128xf32>
    %c2_85 = arith.constant 2 : index
    %c2_86 = arith.constant 2 : index
    %197 = memref.load %arg4[%c2_85, %c2_86] : memref<4x6xf32, #tpu.memory_space<smem>>
    %198 = vector.broadcast %197 : f32 to vector<1x128xf32>
    %199 = arith.mulf %198, %113 : vector<1x128xf32>
    %200 = arith.addf %196, %199 : vector<1x128xf32>
    %c3_87 = arith.constant 3 : index
    %c2_88 = arith.constant 2 : index
    %201 = memref.load %arg4[%c3_87, %c2_88] : memref<4x6xf32, #tpu.memory_space<smem>>
    %202 = vector.broadcast %201 : f32 to vector<1x128xf32>
    %203 = arith.mulf %202, %148 : vector<1x128xf32>
    %204 = arith.addf %200, %203 : vector<1x128xf32>
    %205 = math.tanh %204 : vector<1x128xf32>
    %c3_89 = arith.constant 3 : index
    %206 = memref.load %arg5[%c3_89] : memref<6xf32, #tpu.memory_space<smem>>
    %c0_90 = arith.constant 0 : index
    %c3_91 = arith.constant 3 : index
    %207 = memref.load %arg4[%c0_90, %c3_91] : memref<4x6xf32, #tpu.memory_space<smem>>
    %208 = vector.broadcast %207 : f32 to vector<1x128xf32>
    %209 = arith.mulf %208, %43 : vector<1x128xf32>
    %210 = vector.broadcast %206 : f32 to vector<1x128xf32>
    %211 = arith.addf %210, %209 : vector<1x128xf32>
    %c1_92 = arith.constant 1 : index
    %c3_93 = arith.constant 3 : index
    %212 = memref.load %arg4[%c1_92, %c3_93] : memref<4x6xf32, #tpu.memory_space<smem>>
    %213 = vector.broadcast %212 : f32 to vector<1x128xf32>
    %214 = arith.mulf %213, %78 : vector<1x128xf32>
    %215 = arith.addf %211, %214 : vector<1x128xf32>
    %c2_94 = arith.constant 2 : index
    %c3_95 = arith.constant 3 : index
    %216 = memref.load %arg4[%c2_94, %c3_95] : memref<4x6xf32, #tpu.memory_space<smem>>
    %217 = vector.broadcast %216 : f32 to vector<1x128xf32>
    %218 = arith.mulf %217, %113 : vector<1x128xf32>
    %219 = arith.addf %215, %218 : vector<1x128xf32>
    %c3_96 = arith.constant 3 : index
    %c3_97 = arith.constant 3 : index
    %220 = memref.load %arg4[%c3_96, %c3_97] : memref<4x6xf32, #tpu.memory_space<smem>>
    %221 = vector.broadcast %220 : f32 to vector<1x128xf32>
    %222 = arith.mulf %221, %148 : vector<1x128xf32>
    %223 = arith.addf %219, %222 : vector<1x128xf32>
    %224 = math.tanh %223 : vector<1x128xf32>
    %c4_98 = arith.constant 4 : index
    %225 = memref.load %arg5[%c4_98] : memref<6xf32, #tpu.memory_space<smem>>
    %c0_99 = arith.constant 0 : index
    %c4_100 = arith.constant 4 : index
    %226 = memref.load %arg4[%c0_99, %c4_100] : memref<4x6xf32, #tpu.memory_space<smem>>
    %227 = vector.broadcast %226 : f32 to vector<1x128xf32>
    %228 = arith.mulf %227, %43 : vector<1x128xf32>
    %229 = vector.broadcast %225 : f32 to vector<1x128xf32>
    %230 = arith.addf %229, %228 : vector<1x128xf32>
    %c1_101 = arith.constant 1 : index
    %c4_102 = arith.constant 4 : index
    %231 = memref.load %arg4[%c1_101, %c4_102] : memref<4x6xf32, #tpu.memory_space<smem>>
    %232 = vector.broadcast %231 : f32 to vector<1x128xf32>
    %233 = arith.mulf %232, %78 : vector<1x128xf32>
    %234 = arith.addf %230, %233 : vector<1x128xf32>
    %c2_103 = arith.constant 2 : index
    %c4_104 = arith.constant 4 : index
    %235 = memref.load %arg4[%c2_103, %c4_104] : memref<4x6xf32, #tpu.memory_space<smem>>
    %236 = vector.broadcast %235 : f32 to vector<1x128xf32>
    %237 = arith.mulf %236, %113 : vector<1x128xf32>
    %238 = arith.addf %234, %237 : vector<1x128xf32>
    %c3_105 = arith.constant 3 : index
    %c4_106 = arith.constant 4 : index
    %239 = memref.load %arg4[%c3_105, %c4_106] : memref<4x6xf32, #tpu.memory_space<smem>>
    %240 = vector.broadcast %239 : f32 to vector<1x128xf32>
    %241 = arith.mulf %240, %148 : vector<1x128xf32>
    %242 = arith.addf %238, %241 : vector<1x128xf32>
    %243 = math.tanh %242 : vector<1x128xf32>
    %c5_107 = arith.constant 5 : index
    %244 = memref.load %arg5[%c5_107] : memref<6xf32, #tpu.memory_space<smem>>
    %c0_108 = arith.constant 0 : index
    %c5_109 = arith.constant 5 : index
    %245 = memref.load %arg4[%c0_108, %c5_109] : memref<4x6xf32, #tpu.memory_space<smem>>
    %246 = vector.broadcast %245 : f32 to vector<1x128xf32>
    %247 = arith.mulf %246, %43 : vector<1x128xf32>
    %248 = vector.broadcast %244 : f32 to vector<1x128xf32>
    %249 = arith.addf %248, %247 : vector<1x128xf32>
    %c1_110 = arith.constant 1 : index
    %c5_111 = arith.constant 5 : index
    %250 = memref.load %arg4[%c1_110, %c5_111] : memref<4x6xf32, #tpu.memory_space<smem>>
    %251 = vector.broadcast %250 : f32 to vector<1x128xf32>
    %252 = arith.mulf %251, %78 : vector<1x128xf32>
    %253 = arith.addf %249, %252 : vector<1x128xf32>
    %c2_112 = arith.constant 2 : index
    %c5_113 = arith.constant 5 : index
    %254 = memref.load %arg4[%c2_112, %c5_113] : memref<4x6xf32, #tpu.memory_space<smem>>
    %255 = vector.broadcast %254 : f32 to vector<1x128xf32>
    %256 = arith.mulf %255, %113 : vector<1x128xf32>
    %257 = arith.addf %253, %256 : vector<1x128xf32>
    %c3_114 = arith.constant 3 : index
    %c5_115 = arith.constant 5 : index
    %258 = memref.load %arg4[%c3_114, %c5_115] : memref<4x6xf32, #tpu.memory_space<smem>>
    %259 = vector.broadcast %258 : f32 to vector<1x128xf32>
    %260 = arith.mulf %259, %148 : vector<1x128xf32>
    %261 = arith.addf %257, %260 : vector<1x128xf32>
    %262 = math.tanh %261 : vector<1x128xf32>
    %c0_116 = arith.constant 0 : index
    %263 = memref.load %arg7[%c0_116] : memref<1xf32, #tpu.memory_space<smem>>
    %c0_117 = arith.constant 0 : index
    %c0_118 = arith.constant 0 : index
    %264 = memref.load %arg6[%c0_117, %c0_118] : memref<6x1xf32, #tpu.memory_space<smem>>
    %265 = vector.broadcast %264 : f32 to vector<1x128xf32>
    %266 = arith.mulf %265, %167 : vector<1x128xf32>
    %267 = vector.broadcast %263 : f32 to vector<1x128xf32>
    %268 = arith.addf %267, %266 : vector<1x128xf32>
    %c1_119 = arith.constant 1 : index
    %c0_120 = arith.constant 0 : index
    %269 = memref.load %arg6[%c1_119, %c0_120] : memref<6x1xf32, #tpu.memory_space<smem>>
    %270 = vector.broadcast %269 : f32 to vector<1x128xf32>
    %271 = arith.mulf %270, %186 : vector<1x128xf32>
    %272 = arith.addf %268, %271 : vector<1x128xf32>
    %c2_121 = arith.constant 2 : index
    %c0_122 = arith.constant 0 : index
    %273 = memref.load %arg6[%c2_121, %c0_122] : memref<6x1xf32, #tpu.memory_space<smem>>
    %274 = vector.broadcast %273 : f32 to vector<1x128xf32>
    %275 = arith.mulf %274, %205 : vector<1x128xf32>
    %276 = arith.addf %272, %275 : vector<1x128xf32>
    %c3_123 = arith.constant 3 : index
    %c0_124 = arith.constant 0 : index
    %277 = memref.load %arg6[%c3_123, %c0_124] : memref<6x1xf32, #tpu.memory_space<smem>>
    %278 = vector.broadcast %277 : f32 to vector<1x128xf32>
    %279 = arith.mulf %278, %224 : vector<1x128xf32>
    %280 = arith.addf %276, %279 : vector<1x128xf32>
    %c4_125 = arith.constant 4 : index
    %c0_126 = arith.constant 0 : index
    %281 = memref.load %arg6[%c4_125, %c0_126] : memref<6x1xf32, #tpu.memory_space<smem>>
    %282 = vector.broadcast %281 : f32 to vector<1x128xf32>
    %283 = arith.mulf %282, %243 : vector<1x128xf32>
    %284 = arith.addf %280, %283 : vector<1x128xf32>
    %c5_127 = arith.constant 5 : index
    %c0_128 = arith.constant 0 : index
    %285 = memref.load %arg6[%c5_127, %c0_128] : memref<6x1xf32, #tpu.memory_space<smem>>
    %286 = vector.broadcast %285 : f32 to vector<1x128xf32>
    %287 = arith.mulf %286, %262 : vector<1x128xf32>
    %288 = arith.addf %284, %287 : vector<1x128xf32>
    %289 = math.tanh %288 : vector<1x128xf32>
    %cst = arith.constant 5.000000e-01 : f32
    %290 = vector.broadcast %cst : f32 to vector<1x128xf32>
    %291 = arith.mulf %290, %289 : vector<1x128xf32>
    %cst_129 = arith.constant 5.000000e-01 : f32
    %292 = vector.broadcast %cst_129 : f32 to vector<1x128xf32>
    %293 = arith.addf %291, %292 : vector<1x128xf32>
    %c0_130 = arith.constant 0 : index
    %c0_131 = arith.constant 0 : index
    %294 = vector.load %arg8[%c0_130, %c0_131] : memref<1x128xf32, #tpu.memory_space<vmem>>, vector<1x128xf32>
    tpu.vector_store %arg8[%c0_130, %c0_131], %293 {strides = array<i32>} : memref<1x128xf32, #tpu.memory_space<vmem>>, vector<1x128xf32>,
    return
  }
  func.func @transform_0(%arg0: i32) -> (i32, i32) {
    %c0_i32 = arith.constant 0 : i32
    %c0_i32_0 = arith.constant 0 : i32
    return %c0_i32, %arg0 : i32, i32
  }
  func.func @transform_1(%arg0: i32) -> (i32, i32) {
    %c0_i32 = arith.constant 0 : i32
    %c0_i32_0 = arith.constant 0 : i32
    %c0_i32_1 = arith.constant 0 : i32
    return %c0_i32, %c0_i32_0 : i32, i32
  }
  func.func @transform_2(%arg0: i32) -> i32 {
    %c0_i32 = arith.constant 0 : i32
    %c0_i32_0 = arith.constant 0 : i32
    return %c0_i32 : i32
  }
  func.func @transform_3(%arg0: i32) -> (i32, i32) {
    %c0_i32 = arith.constant 0 : i32
    %c0_i32_0 = arith.constant 0 : i32
    %c0_i32_1 = arith.constant 0 : i32
    return %c0_i32, %c0_i32_0 : i32, i32
  }
  func.func @transform_4(%arg0: i32) -> i32 {
    %c0_i32 = arith.constant 0 : i32
    %c0_i32_0 = arith.constant 0 : i32
    return %c0_i32 : i32
  }
  func.func @transform_5(%arg0: i32) -> (i32, i32) {
    %c0_i32 = arith.constant 0 : i32
    %c0_i32_0 = arith.constant 0 : i32
    %c0_i32_1 = arith.constant 0 : i32
    return %c0_i32, %c0_i32_0 : i32, i32
  }
  func.func @transform_6(%arg0: i32) -> i32 {
    %c0_i32 = arith.constant 0 : i32
    %c0_i32_0 = arith.constant 0 : i32
    return %c0_i32 : i32
  }
  func.func @transform_7(%arg0: i32) -> (i32, i32) {
    %c0_i32 = arith.constant 0 : i32
    %c0_i32_0 = arith.constant 0 : i32
    return %c0_i32, %arg0 : i32, i32
  }
}

</mosaic_0001>

<llo_original>
// kernel: mymodel_forward.1
$region0: #{mymodel_forward.1}
  #allocation0 [shape = 'u32[]', space=smem, size = 0x4, offset = 0x4, fixed_abs, tag = 'smem constant byte address 0x4 - core index']
  #allocation1 [shape = 'u32[144,128]{1,0:T(1,128)}', space=vmem, size = 0x12000, scoped, tag = 'internal scratch']
  #allocation2 [shape = 'f32[1]{0:T(128)S(6)}', space=smem, size = 0x200, scoped, tag = 'scoped memory for mymodel_forward.1']
  %s0 = inlined_call_operand.vmem [shape: f32[8,128], index: 0, kind: input, shape index: {}]
  %s1 = inlined_call_operand.vmem [shape: f32[8,4], index: 1, kind: input, shape index: {}]
  %s2 = inlined_call_operand.vmem [shape: f32[4], index: 2, kind: input, shape index: {}]
  %s3 = inlined_call_operand.vmem [shape: f32[4,6], index: 3, kind: input, shape index: {}]
  %s4 = inlined_call_operand.vmem [shape: f32[6], index: 4, kind: input, shape index: {}]
  %s5 = inlined_call_operand.vmem [shape: f32[6,1], index: 5, kind: input, shape index: {}]
  %s6 = inlined_call_operand.<no memory space> [shape: f32[1], index: 6, kind: input, shape index: {}]
  %s7 = inlined_call_operand.vmem [shape: f32[1,128], index: 7, kind: output, shape index: {}]
  %s8 = sld [smem:[#allocation0]]
  $region58: #{mymodel_forward.1} parent=0
    _
  %s10 = ssub.s32 1, %s8
  %s11 = scalar_select 0, %s10, %s8
  %12 = sst [smem:[#allocation2]] %s6
  $region1: #{mymodel_forward.1} parent=0
    #allocation3 [shape = 'u8[4096]{0}', space=smem, size = 0x1000, scoped, tag = 'input window, operand 1, single buffered']
    #allocation4 [shape = 's32[1]{0}', space=sflag, size = 0x4, scoped, tag = 'scoped memory for mymodel_forward.1']
    #allocation5 [shape = 'u8[512]{0}', space=smem, size = 0x200, scoped, tag = 'input window, operand 2, single buffered']
    #allocation6 [shape = 's32[1]{0}', space=sflag, size = 0x4, scoped, tag = 'scoped memory for mymodel_forward.1']
    #allocation7 [shape = 'u8[2048]{0}', space=smem, size = 0x800, scoped, tag = 'input window, operand 3, single buffered']
    #allocation8 [shape = 'u8[512]{0}', space=smem, size = 0x200, scoped, tag = 'input window, operand 4, single buffered']
    #allocation9 [shape = 's32[1]{0}', space=sflag, size = 0x4, scoped, tag = 'scoped memory for mymodel_forward.1']
    #allocation10 [shape = 'u8[4096]{0}', space=smem, size = 0x1000, scoped, tag = 'input window, operand 5, single buffered']
    %13 = vsyncpa [#allocation4], 0
    %14 = vsyncpa [#allocation6], 0
    %15 = vsyncpa [#allocation9], 0
    // Predicated region
    $region2: #{mymodel_forward.1} parent=1 // pred_check
      _
    $region3: #{mymodel_forward.1} parent=1 // pred_check_branch
      %17 = sbr.rel (0) target = $region5
    $region4: #{mymodel_forward.1} parent=1 // pred_region
      _
    $region5: #{mymodel_forward.1} parent=1 // pred_fallthru
      _
    // Predicated region
    $region6: #{mymodel_forward.1} parent=1 // pred_check
      _
    $region7: #{mymodel_forward.1} parent=1 // pred_check_branch
      %19 = sbr.rel (0) target = $region9
    $region8: #{mymodel_forward.1} parent=1 // pred_region
      %s21 = ssub.s32 128, 128
      %22 = vsyncadd [#allocation4], %s21
      %s24 = sshll.u32 %s1, 4
      %s25 = int_to_ptr.vmem [resolvable:$true] %s24
      %27 = dma.vmem_to_smem %s25, 128, [#allocation3], [#allocation4]
    $region9: #{mymodel_forward.1} parent=1 // pred_fallthru
      _
    // Predicated region
    $region10: #{mymodel_forward.1} parent=1 // pred_check
      _
    $region11: #{mymodel_forward.1} parent=1 // pred_check_branch
      %29 = sbr.rel (0) target = $region13
    $region12: #{mymodel_forward.1} parent=1 // pred_region
      %s31 = ssub.s32 16, 16
      %32 = vsyncadd [#allocation6], %s31
      %s34 = sshll.u32 %s2, 4
      %s35 = int_to_ptr.vmem [resolvable:$true] %s34
      %37 = dma.vmem_to_smem %s35, 16, [#allocation5], [#allocation6]
    $region13: #{mymodel_forward.1} parent=1 // pred_fallthru
      _
    // Predicated region
    $region14: #{mymodel_forward.1} parent=1 // pred_check
      _
    $region15: #{mymodel_forward.1} parent=1 // pred_check_branch
      %39 = sbr.rel (0) target = $region17
    $region16: #{mymodel_forward.1} parent=1 // pred_region
      %s41 = ssub.s32 64, 64
      %42 = vsyncadd [#allocation6], %s41
      %s44 = sshll.u32 %s3, 4
      %s45 = int_to_ptr.vmem [resolvable:$true] %s44
      %47 = dma.vmem_to_smem %s45, 64, [#allocation7], [#allocation6]
    $region17: #{mymodel_forward.1} parent=1 // pred_fallthru
      _
    // Predicated region
    $region18: #{mymodel_forward.1} parent=1 // pred_check
      _
    $region19: #{mymodel_forward.1} parent=1 // pred_check_branch
      %49 = sbr.rel (0) target = $region21
    $region20: #{mymodel_forward.1} parent=1 // pred_region
      %s51 = ssub.s32 16, 16
      %52 = vsyncadd [#allocation9], %s51
      %s54 = sshll.u32 %s4, 4
      %s55 = int_to_ptr.vmem [resolvable:$true] %s54
      %57 = dma.vmem_to_smem %s55, 16, [#allocation8], [#allocation9]
    $region21: #{mymodel_forward.1} parent=1 // pred_fallthru
      _
    // Predicated region
    $region22: #{mymodel_forward.1} parent=1 // pred_check
      _
    $region23: #{mymodel_forward.1} parent=1 // pred_check_branch
      %59 = sbr.rel (0) target = $region25
    $region24: #{mymodel_forward.1} parent=1 // pred_region
      %s61 = ssub.s32 128, 128
      %62 = vsyncadd [#allocation9], %s61
      %s64 = sshll.u32 %s5, 4
      %s65 = int_to_ptr.vmem [resolvable:$true] %s64
      %67 = dma.vmem_to_smem %s65, 128, [#allocation10], [#allocation9]
    $region25: #{mymodel_forward.1} parent=1 // pred_fallthru
      _
    // Predicated region
    $region26: #{mymodel_forward.1} parent=1 // pred_check
      _
    $region27: #{mymodel_forward.1} parent=1 // pred_check_branch
      %69 = sbr.rel (0) target = $region29
    $region28: #{mymodel_forward.1} parent=1 // pred_region
      _
    $region29: #{mymodel_forward.1} parent=1 // pred_fallthru
      _
    // Predicated region
    $region30: #{mymodel_forward.1} parent=1 // pred_check
      _
    $region31: #{mymodel_forward.1} parent=1 // pred_check_branch
      %71 = sbr.rel (0) target = $region33
    $region32: #{mymodel_forward.1} parent=1 // pred_region
      %72 = dma.done [#allocation4], 128
    $region33: #{mymodel_forward.1} parent=1 // pred_fallthru
      _
    // Predicated region
    $region34: #{mymodel_forward.1} parent=1 // pred_check
      _
    $region35: #{mymodel_forward.1} parent=1 // pred_check_branch
      %74 = sbr.rel (0) target = $region37
    $region36: #{mymodel_forward.1} parent=1 // pred_region
      %75 = dma.done [#allocation6], 16
    $region37: #{mymodel_forward.1} parent=1 // pred_fallthru
      _
    // Predicated region
    $region38: #{mymodel_forward.1} parent=1 // pred_check
      _
    $region39: #{mymodel_forward.1} parent=1 // pred_check_branch
      %77 = sbr.rel (0) target = $region41
    $region40: #{mymodel_forward.1} parent=1 // pred_region
      %78 = dma.done [#allocation6], 64
    $region41: #{mymodel_forward.1} parent=1 // pred_fallthru
      _
    // Predicated region
    $region42: #{mymodel_forward.1} parent=1 // pred_check
      _
    $region43: #{mymodel_forward.1} parent=1 // pred_check_branch
      %80 = sbr.rel (0) target = $region45
    $region44: #{mymodel_forward.1} parent=1 // pred_region
      %81 = dma.done [#allocation9], 16
    $region45: #{mymodel_forward.1} parent=1 // pred_fallthru
      _
    // Predicated region
    $region46: #{mymodel_forward.1} parent=1 // pred_check
      _
    $region47: #{mymodel_forward.1} parent=1 // pred_check_branch
      %83 = sbr.rel (0) target = $region49
    $region48: #{mymodel_forward.1} parent=1 // pred_region
      %84 = dma.done [#allocation9], 128
    $region49: #{mymodel_forward.1} parent=1 // pred_fallthru
      _
    %85 = sfence
    %v86 = vld [vmem:[%s0] sm:$0xff]
    %s87 = sld [smem:[#allocation5]]
    %s88 = sld [smem:[#allocation3]]
    %v89 = vstv %s88
    %v90 = vmul.f32 %v89, %v86
    %v91 = vstv %s87
    %v92 = vadd.f32 %v91, %v90
    %s93 = sld [smem:[#allocation3 + $0x80]]
    %v94 = vstv %s93
    %v95 = vmul.f32 %v94, %v86
    %v97 = vrot.slane %v95, 1
    %v99 = vadd.f32 %v92, %v97
    %s100 = sld [smem:[#allocation3 + $0x100]]
    %v101 = vstv %s100
    %v102 = vmul.f32 %v101, %v86
    %v104 = vrot.slane %v102, 2
    %v106 = vadd.f32 %v99, %v104
    %s107 = sld [smem:[#allocation3 + $0x180]]
    %v108 = vstv %s107
    %v109 = vmul.f32 %v108, %v86
    %v111 = vrot.slane %v109, 3
    %v113 = vadd.f32 %v106, %v111
    %s114 = sld [smem:[#allocation3 + $0x200]]
    %v115 = vstv %s114
    %v116 = vmul.f32 %v115, %v86
    %v118 = vrot.slane %v116, 4
    %v120 = vadd.f32 %v113, %v118
    %s121 = sld [smem:[#allocation3 + $0x280]]
    %v122 = vstv %s121
    %v123 = vmul.f32 %v122, %v86
    %v125 = vrot.slane %v123, 5
    %v127 = vadd.f32 %v120, %v125
    %s128 = sld [smem:[#allocation3 + $0x300]]
    %v129 = vstv %s128
    %v130 = vmul.f32 %v129, %v86
    %v132 = vrot.slane %v130, 6
    %v134 = vadd.f32 %v127, %v132
    %s135 = sld [smem:[#allocation3 + $0x380]]
    %v136 = vstv %s135
    %v137 = vmul.f32 %v136, %v86
    %v139 = vrot.slane %v137, 7
    %v141 = vadd.f32 %v134, %v139
    %v142 = vtanh.pop %v141
    %s143 = sld [smem:[#allocation5 + $0x1]]
    %s144 = sld [smem:[#allocation3 + $0x1]]
    %v145 = vstv %s144
    %v146 = vmul.f32 %v145, %v86
    %v147 = vstv %s143
    %v148 = vadd.f32 %v147, %v146
    %s149 = sld [smem:[#allocation3 + $0x81]]
    %v150 = vstv %s149
    %v151 = vmul.f32 %v150, %v86
    %v153 = vrot.slane %v151, 1
    %v155 = vadd.f32 %v148, %v153
    %s156 = sld [smem:[#allocation3 + $0x101]]
    %v157 = vstv %s156
    %v158 = vmul.f32 %v157, %v86
    %v160 = vrot.slane %v158, 2
    %v162 = vadd.f32 %v155, %v160
    %s163 = sld [smem:[#allocation3 + $0x181]]
    %v164 = vstv %s163
    %v165 = vmul.f32 %v164, %v86
    %v167 = vrot.slane %v165, 3
    %v169 = vadd.f32 %v162, %v167
    %s170 = sld [smem:[#allocation3 + $0x201]]
    %v171 = vstv %s170
    %v172 = vmul.f32 %v171, %v86
    %v174 = vrot.slane %v172, 4
    %v176 = vadd.f32 %v169, %v174
    %s177 = sld [smem:[#allocation3 + $0x281]]
    %v178 = vstv %s177
    %v179 = vmul.f32 %v178, %v86
    %v181 = vrot.slane %v179, 5
    %v183 = vadd.f32 %v176, %v181
    %s184 = sld [smem:[#allocation3 + $0x301]]
    %v185 = vstv %s184
    %v186 = vmul.f32 %v185, %v86
    %v188 = vrot.slane %v186, 6
    %v190 = vadd.f32 %v183, %v188
    %s191 = sld [smem:[#allocation3 + $0x381]]
    %v192 = vstv %s191
    %v193 = vmul.f32 %v192, %v86
    %v195 = vrot.slane %v193, 7
    %v197 = vadd.f32 %v190, %v195
    %v198 = vtanh.pop %v197
    %s199 = sld [smem:[#allocation5 + $0x2]]
    %s200 = sld [smem:[#allocation3 + $0x2]]
    %v201 = vstv %s200
    %v202 = vmul.f32 %v201, %v86
    %v203 = vstv %s199
    %v204 = vadd.f32 %v203, %v202
    %s205 = sld [smem:[#allocation3 + $0x82]]
    %v206 = vstv %s205
    %v207 = vmul.f32 %v206, %v86
    %v209 = vrot.slane %v207, 1
    %v211 = vadd.f32 %v204, %v209
    %s212 = sld [smem:[#allocation3 + $0x102]]
    %v213 = vstv %s212
    %v214 = vmul.f32 %v213, %v86
    %v216 = vrot.slane %v214, 2
    %v218 = vadd.f32 %v211, %v216
    %s219 = sld [smem:[#allocation3 + $0x182]]
    %v220 = vstv %s219
    %v221 = vmul.f32 %v220, %v86
    %v223 = vrot.slane %v221, 3
    %v225 = vadd.f32 %v218, %v223
    %s226 = sld [smem:[#allocation3 + $0x202]]
    %v227 = vstv %s226
    %v228 = vmul.f32 %v227, %v86
    %v230 = vrot.slane %v228, 4
    %v232 = vadd.f32 %v225, %v230
    %s233 = sld [smem:[#allocation3 + $0x282]]
    %v234 = vstv %s233
    %v235 = vmul.f32 %v234, %v86
    %v237 = vrot.slane %v235, 5
    %v239 = vadd.f32 %v232, %v237
    %s240 = sld [smem:[#allocation3 + $0x302]]
    %v241 = vstv %s240
    %v242 = vmul.f32 %v241, %v86
    %v244 = vrot.slane %v242, 6
    %v246 = vadd.f32 %v239, %v244
    %s247 = sld [smem:[#allocation3 + $0x382]]
    %v248 = vstv %s247
    %v249 = vmul.f32 %v248, %v86
    %v251 = vrot.slane %v249, 7
    %v253 = vadd.f32 %v246, %v251
    %v254 = vtanh.pop %v253
    %s255 = sld [smem:[#allocation5 + $0x3]]
    %s256 = sld [smem:[#allocation3 + $0x3]]
    %v257 = vstv %s256
    %v258 = vmul.f32 %v257, %v86
    %v259 = vstv %s255
    %v260 = vadd.f32 %v259, %v258
    %s261 = sld [smem:[#allocation3 + $0x83]]
    %v262 = vstv %s261
    %v263 = vmul.f32 %v262, %v86
    %v265 = vrot.slane %v263, 1
    %v267 = vadd.f32 %v260, %v265
    %s268 = sld [smem:[#allocation3 + $0x103]]
    %v269 = vstv %s268
    %v270 = vmul.f32 %v269, %v86
    %v272 = vrot.slane %v270, 2
    %v274 = vadd.f32 %v267, %v272
    %s275 = sld [smem:[#allocation3 + $0x183]]
    %v276 = vstv %s275
    %v277 = vmul.f32 %v276, %v86
    %v279 = vrot.slane %v277, 3
    %v281 = vadd.f32 %v274, %v279
    %s282 = sld [smem:[#allocation3 + $0x203]]
    %v283 = vstv %s282
    %v284 = vmul.f32 %v283, %v86
    %v286 = vrot.slane %v284, 4
    %v288 = vadd.f32 %v281, %v286
    %s289 = sld [smem:[#allocation3 + $0x283]]
    %v290 = vstv %s289
    %v291 = vmul.f32 %v290, %v86
    %v293 = vrot.slane %v291, 5
    %v295 = vadd.f32 %v288, %v293
    %s296 = sld [smem:[#allocation3 + $0x303]]
    %v297 = vstv %s296
    %v298 = vmul.f32 %v297, %v86
    %v300 = vrot.slane %v298, 6
    %v302 = vadd.f32 %v295, %v300
    %s303 = sld [smem:[#allocation3 + $0x383]]
    %v304 = vstv %s303
    %v305 = vmul.f32 %v304, %v86
    %v307 = vrot.slane %v305, 7
    %v309 = vadd.f32 %v302, %v307
    %v310 = vtanh.pop %v309
    %s311 = sld [smem:[#allocation8]]
    %s312 = sld [smem:[#allocation7]]
    %v313 = vstv %s312
    %v314 = vmul.f32 %v313, %v142
    %v315 = vstv %s311
    %v316 = vadd.f32 %v315, %v314
    %s317 = sld [smem:[#allocation7 + $0x80]]
    %v318 = vstv %s317
    %v319 = vmul.f32 %v318, %v198
    %v320 = vadd.f32 %v316, %v319
    %s321 = sld [smem:[#allocation7 + $0x100]]
    %v322 = vstv %s321
    %v323 = vmul.f32 %v322, %v254
    %v324 = vadd.f32 %v320, %v323
    %s325 = sld [smem:[#allocation7 + $0x180]]
    %v326 = vstv %s325
    %v327 = vmul.f32 %v326, %v310
    %v328 = vadd.f32 %v324, %v327
    %v329 = vtanh.pop %v328
    %s330 = sld [smem:[#allocation8 + $0x1]]
    %s331 = sld [smem:[#allocation7 + $0x1]]
    %v332 = vstv %s331
    %v333 = vmul.f32 %v332, %v142
    %v334 = vstv %s330
    %v335 = vadd.f32 %v334, %v333
    %s336 = sld [smem:[#allocation7 + $0x81]]
    %v337 = vstv %s336
    %v338 = vmul.f32 %v337, %v198
    %v339 = vadd.f32 %v335, %v338
    %s340 = sld [smem:[#allocation7 + $0x101]]
    %v341 = vstv %s340
    %v342 = vmul.f32 %v341, %v254
    %v343 = vadd.f32 %v339, %v342
    %s344 = sld [smem:[#allocation7 + $0x181]]
    %v345 = vstv %s344
    %v346 = vmul.f32 %v345, %v310
    %v347 = vadd.f32 %v343, %v346
    %v348 = vtanh.pop %v347
    %s349 = sld [smem:[#allocation8 + $0x2]]
    %s350 = sld [smem:[#allocation7 + $0x2]]
    %v351 = vstv %s350
    %v352 = vmul.f32 %v351, %v142
    %v353 = vstv %s349
    %v354 = vadd.f32 %v353, %v352
    %s355 = sld [smem:[#allocation7 + $0x82]]
    %v356 = vstv %s355
    %v357 = vmul.f32 %v356, %v198
    %v358 = vadd.f32 %v354, %v357
    %s359 = sld [smem:[#allocation7 + $0x102]]
    %v360 = vstv %s359
    %v361 = vmul.f32 %v360, %v254
    %v362 = vadd.f32 %v358, %v361
    %s363 = sld [smem:[#allocation7 + $0x182]]
    %v364 = vstv %s363
    %v365 = vmul.f32 %v364, %v310
    %v366 = vadd.f32 %v362, %v365
    %v367 = vtanh.pop %v366
    %s368 = sld [smem:[#allocation8 + $0x3]]
    %s369 = sld [smem:[#allocation7 + $0x3]]
    %v370 = vstv %s369
    %v371 = vmul.f32 %v370, %v142
    %v372 = vstv %s368
    %v373 = vadd.f32 %v372, %v371
    %s374 = sld [smem:[#allocation7 + $0x83]]
    %v375 = vstv %s374
    %v376 = vmul.f32 %v375, %v198
    %v377 = vadd.f32 %v373, %v376
    %s378 = sld [smem:[#allocation7 + $0x103]]
    %v379 = vstv %s378
    %v380 = vmul.f32 %v379, %v254
    %v381 = vadd.f32 %v377, %v380
    %s382 = sld [smem:[#allocation7 + $0x183]]
    %v383 = vstv %s382
    %v384 = vmul.f32 %v383, %v310
    %v385 = vadd.f32 %v381, %v384
    %v386 = vtanh.pop %v385
    %s387 = sld [smem:[#allocation8 + $0x4]]
    %s388 = sld [smem:[#allocation7 + $0x4]]
    %v389 = vstv %s388
    %v390 = vmul.f32 %v389, %v142
    %v391 = vstv %s387
    %v392 = vadd.f32 %v391, %v390
    %s393 = sld [smem:[#allocation7 + $0x84]]
    %v394 = vstv %s393
    %v395 = vmul.f32 %v394, %v198
    %v396 = vadd.f32 %v392, %v395
    %s397 = sld [smem:[#allocation7 + $0x104]]
    %v398 = vstv %s397
    %v399 = vmul.f32 %v398, %v254
    %v400 = vadd.f32 %v396, %v399
    %s401 = sld [smem:[#allocation7 + $0x184]]
    %v402 = vstv %s401
    %v403 = vmul.f32 %v402, %v310
    %v404 = vadd.f32 %v400, %v403
    %v405 = vtanh.pop %v404
    %s406 = sld [smem:[#allocation8 + $0x5]]
    %s407 = sld [smem:[#allocation7 + $0x5]]
    %v408 = vstv %s407
    %v409 = vmul.f32 %v408, %v142
    %v410 = vstv %s406
    %v411 = vadd.f32 %v410, %v409
    %s412 = sld [smem:[#allocation7 + $0x85]]
    %v413 = vstv %s412
    %v414 = vmul.f32 %v413, %v198
    %v415 = vadd.f32 %v411, %v414
    %s416 = sld [smem:[#allocation7 + $0x105]]
    %v417 = vstv %s416
    %v418 = vmul.f32 %v417, %v254
    %v419 = vadd.f32 %v415, %v418
    %s420 = sld [smem:[#allocation7 + $0x185]]
    %v421 = vstv %s420
    %v422 = vmul.f32 %v421, %v310
    %v423 = vadd.f32 %v419, %v422
    %v424 = vtanh.pop %v423
    %s425 = sld [smem:[#allocation2]]
    %s426 = sld [smem:[#allocation10]]
    %v427 = vstv %s426
    %v428 = vmul.f32 %v427, %v329
    %v429 = vstv %s425
    %v430 = vadd.f32 %v429, %v428
    %s431 = sld [smem:[#allocation10 + $0x80]]
    %v432 = vstv %s431
    %v433 = vmul.f32 %v432, %v348
    %v434 = vadd.f32 %v430, %v433
    %s435 = sld [smem:[#allocation10 + $0x100]]
    %v436 = vstv %s435
    %v437 = vmul.f32 %v436, %v367
    %v438 = vadd.f32 %v434, %v437
    %s439 = sld [smem:[#allocation10 + $0x180]]
    %v440 = vstv %s439
    %v441 = vmul.f32 %v440, %v386
    %v442 = vadd.f32 %v438, %v441
    %s443 = sld [smem:[#allocation10 + $0x200]]
    %v444 = vstv %s443
    %v445 = vmul.f32 %v444, %v405
    %v446 = vadd.f32 %v442, %v445
    %s447 = sld [smem:[#allocation10 + $0x280]]
    %v448 = vstv %s447
    %v449 = vmul.f32 %v448, %v424
    %v450 = vadd.f32 %v446, %v449
    %v451 = vtanh.pop %v450
    %v452 = vmul.f32 %v451, 0.5
    %v453 = vadd.f32 %v452, 0.5
    %454 = vst [vmem:[%s7] sm:$0x1] %v453
    // Predicated region
    $region50: #{mymodel_forward.1} parent=1 // pred_check
      _
    $region51: #{mymodel_forward.1} parent=1 // pred_check_branch
      %456 = sbr.rel (0) target = $region53
    $region52: #{mymodel_forward.1} parent=1 // pred_region
      _
    $region53: #{mymodel_forward.1} parent=1 // pred_fallthru
      _
    // Predicated region
    $region54: #{mymodel_forward.1} parent=1 // pred_check
      _
    $region55: #{mymodel_forward.1} parent=1 // pred_check_branch
      %458 = sbr.rel (0) target = $region57
    $region56: #{mymodel_forward.1} parent=1 // pred_region
      _
    $region57: #{mymodel_forward.1} parent=1 // pred_fallthru
      _
    %459 = vsyncpa [#allocation4], 1
    %460 = vsyncpa [#allocation6], 1
    %461 = vsyncpa [#allocation9], 1

</llo_original>
